<compile_context>
chip_gen: v5e
topology: v5e:2x2
jax: 0.10.0
libtpu: 0.0.40
codegen_flags: <defaults>
</compile_context>

<pallas_src>
import jax
import jax.numpy as jnp
from jax import lax
from jax.experimental import pallas as pl
from jax.experimental.pallas import tpu as pltpu


# ----------------------------------------------------------------------------
# Small helpers
# ----------------------------------------------------------------------------
def _round_up(x, m):
    return ((x + m - 1) // m) * m


def _pad2d(a, rows, cols):
    pr, pc = rows - a.shape[0], cols - a.shape[1]
    if pr or pc:
        a = jnp.pad(a, ((0, pr), (0, pc)))
    return a


# ----------------------------------------------------------------------------
# Glue: im2col patch extraction (pure JAX, layout plumbing only)
# ----------------------------------------------------------------------------
def _im2col(x_nhwc, k, stride, padding):
    if padding:
        x_nhwc = jnp.pad(
            x_nhwc, ((0, 0), (padding, padding), (padding, padding), (0, 0)))
    N, H, W, C = x_nhwc.shape
    Ho = (H - k) // stride + 1
    Wo = (W - k) // stride + 1
    taps = []
    for kh in range(k):
        for kw in range(k):
            taps.append(
                x_nhwc[:, kh:kh + stride * (Ho - 1) + 1:stride,
                       kw:kw + stride * (Wo - 1) + 1:stride, :])
    patches = jnp.stack(taps, axis=3)  # (N, Ho, Wo, k*k, C), C contiguous
    return patches, (N, Ho, Wo)


# ----------------------------------------------------------------------------
# Pallas kernels (hot path)
# ----------------------------------------------------------------------------
def _matmul_bn_relu_kernel(p_ref, w_ref, s_ref, b_ref, o_ref, acc_ref):
    # p_ref: (tm, tk) bf16 patches; w_ref: (tk, tn) bf16; s/b: (1, tn) f32.
    @pl.when(pl.program_id(2) == 0)
    def _init():
        acc_ref[...] = jnp.zeros_like(acc_ref)

    acc_ref[...] += jnp.dot(p_ref[...], w_ref[...],
                            preferred_element_type=jnp.float32)

    @pl.when(pl.program_id(2) == pl.num_programs(2) - 1)
    def _epilogue():
        y = acc_ref[...] * s_ref[...] + b_ref[...]          # folded BN (f32)
        o_ref[...] = jnp.maximum(y, 0.0).astype(o_ref.dtype)  # ReLU


def _maxpool_kernel(p_ref, o_ref):
    # p_ref: (9, tm, C) window taps; reduce over the leading tap axis (VPU).
    o_ref[...] = jnp.max(p_ref[...], axis=0)


# ----------------------------------------------------------------------------
# Wrappers around pallas_call
# ----------------------------------------------------------------------------
_VMEM_LIMIT = 32 * 1024 * 1024  # safe scoped-VMEM budget on v5e/v6e/v7x


def _matmul_bn_relu(p2d, w2d, scale, bias, *, tm_pref=512, tn_pref=256,
                    tk_pref=512):
    M, K = p2d.shape
    Kw, Cout = w2d.shape
    assert K == Kw

    # Tile sizes: 8-aligned sublane dim, 128-aligned lane dims; padded exactly.
    tm = min(tm_pref, _round_up(M, 8))
    tk = min(tk_pref, _round_up(K, 128))
    tn = min(tn_pref, _round_up(Cout, 128))
    Mp, Kp, Np = _round_up(M, tm), _round_up(K, tk), _round_up(Cout, tn)

    p = _pad2d(p2d.astype(jnp.bfloat16), Mp, Kp)
    w = _pad2d(w2d.astype(jnp.bfloat16), Kp, Np)
    s = _pad2d(scale.reshape(1, Cout).astype(jnp.float32), 1, Np)
    b = _pad2d(bias.reshape(1, Cout).astype(jnp.float32), 1, Np)

    grid = (Mp // tm, Np // tn, Kp // tk)
    out = pl.pallas_call(
        _matmul_bn_relu_kernel,
        grid=grid,
        out_shape=jax.ShapeDtypeStruct((Mp, Np), jnp.float32),
        in_specs=[
            pl.BlockSpec((tm, tk), lambda i, j, k: (i, k)),
            pl.BlockSpec((tk, tn), lambda i, j, k: (k, j)),
            pl.BlockSpec((1, tn), lambda i, j, k: (0, j)),
            pl.BlockSpec((1, tn), lambda i, j, k: (0, j)),
        ],
        out_specs=pl.BlockSpec((tm, tn), lambda i, j, k: (i, j)),
        scratch_shapes=[pltpu.VMEM((tm, tn), jnp.float32)],
        compiler_params=pltpu.CompilerParams(
            dimension_semantics=("parallel", "parallel", "arbitrary"),
            vmem_limit_bytes=_VMEM_LIMIT),
    )(p, w, s, b)
    return out[:M, :Cout]


def conv_bn_relu(x_nhwc, params, k, stride, padding=0):
    w, scale, bias = params          # w: (k, k, Cin, Cout); scale/bias: (Cout,)
    Cin = x_nhwc.shape[-1]
    Cout = w.shape[-1]
    xb = x_nhwc.astype(jnp.bfloat16)  # halve HBM bytes feeding the MXU

    if k == 1 and stride == 1 and padding == 0:
        # 1x1 conv is already a plain matmul: no im2col copy.
        N, H, W, _ = xb.shape
        Ho, Wo = H, W
        p2d = xb.reshape(N * H * W, Cin)
    else:
        patches, (N, Ho, Wo) = _im2col(xb, k, stride, padding)
        p2d = patches.reshape(N * Ho * Wo, k * k * Cin)

    w2d = w.reshape(k * k * Cin, Cout)
    out = _matmul_bn_relu(p2d, w2d, scale, bias)
    return out.reshape(N, Ho, Wo, Cout)


def maxpool3x3_s2(x_nhwc):
    N, H, W, C = x_nhwc.shape
    Ho = (H - 3) // 2 + 1
    Wo = (W - 3) // 2 + 1
    M = N * Ho * Wo
    taps = []
    for kh in range(3):
        for kw in range(3):
            taps.append(
                x_nhwc[:, kh:kh + 2 * (Ho - 1) + 1:2,
                       kw:kw + 2 * (Wo - 1) + 1:2, :].reshape(M, C))
    p = jnp.stack(taps, axis=0)  # (9, M, C) — stacked directly, no transpose

    tm = min(512, _round_up(M, 8))
    Mp = _round_up(M, tm)
    if Mp != M:
        p = jnp.pad(p, ((0, 0), (0, Mp - M), (0, 0)))

    out = pl.pallas_call(
        _maxpool_kernel,
        grid=(Mp // tm,),
        out_shape=jax.ShapeDtypeStruct((Mp, C), jnp.float32),
        in_specs=[pl.BlockSpec((9, tm, C), lambda i: (0, i, 0))],
        out_specs=pl.BlockSpec((tm, C), lambda i: (i, 0)),
        compiler_params=pltpu.CompilerParams(
            dimension_semantics=("parallel",),
            vmem_limit_bytes=_VMEM_LIMIT),
    )(p.astype(jnp.float32))
    return out[:M].reshape(N, Ho, Wo, C)


# ----------------------------------------------------------------------------
# Parameter construction (deterministic, synthetic). BatchNorm is applied in
# inference mode and folded into per-channel scale/bias.
# ----------------------------------------------------------------------------
def init_basic_conv(key, cin, cout, k, eps=1e-3):
    kw_, kg, kb, km, kv = jax.random.split(key, 5)
    w = jax.random.normal(kw_, (k, k, cin, cout), jnp.float32) / jnp.sqrt(
        float(k * k * cin))
    gamma = 1.0 + 0.1 * jax.random.normal(kg, (cout,), jnp.float32)
    beta = 0.1 * jax.random.normal(kb, (cout,), jnp.float32)
    mean = 0.1 * jax.random.normal(km, (cout,), jnp.float32)
    var = jnp.abs(jax.random.normal(kv, (cout,), jnp.float32)) + 0.5
    scale = gamma / jnp.sqrt(var + eps)
    bias = beta - mean * scale
    return (w, scale, bias)


class ReductionA:
    """JAX/Pallas equivalent of the PyTorch Reduction_A module (BN in eval mode)."""

    def __init__(self, key, in_features, m=lambda c: c // 32):
        k0, k1a, k1b, k1c = jax.random.split(key, 4)
        self.b0 = init_basic_conv(k0, in_features, m(384), 3)       # 3x3 s2
        self.b1a = init_basic_conv(k1a, in_features, m(192), 1)     # 1x1 s1
        self.b1b = init_basic_conv(k1b, m(192), m(224), 3)          # 3x3 s1 p1
        self.b1c = init_basic_conv(k1c, m(224), m(256), 3)          # 3x3 s2
        self.out_features = m(384) + m(256) + in_features

    def __call__(self, x_nchw):
        x = jnp.transpose(x_nchw, (0, 2, 3, 1))          # NCHW -> NHWC
        x0 = conv_bn_relu(x, self.b0, 3, 2, 0)
        x1 = conv_bn_relu(x, self.b1a, 1, 1, 0)
        x1 = conv_bn_relu(x1, self.b1b, 3, 1, 1)
        x1 = conv_bn_relu(x1, self.b1c, 3, 2, 0)
        x2 = maxpool3x3_s2(x)
        out = jnp.concatenate([x0, x1, x2], axis=-1)     # channel concat
        return jnp.transpose(out, (0, 3, 1, 2))          # NHWC -> NCHW


# ----------------------------------------------------------------------------
# Pure-JAX reference (for correctness check only)
# ----------------------------------------------------------------------------
def _ref_conv_bn_relu(x_nhwc, params, stride, padding):
    w, scale, bias = params
    y = lax.conv_general_dilated(
        x_nhwc, w, window_strides=(stride, stride),
        padding=[(padding, padding), (padding, padding)],
        dimension_numbers=("NHWC", "HWIO", "NHWC"))
    return jnp.maximum(y * scale + bias, 0.0)


def _ref_forward(mod, x_nchw):
    x = jnp.transpose(x_nchw, (0, 2, 3, 1))
    x0 = _ref_conv_bn_relu(x, mod.b0, 2, 0)
    x1 = _ref_conv_bn_relu(x, mod.b1a, 1, 0)
    x1 = _ref_conv_bn_relu(x1, mod.b1b, 1, 1)
    x1 = _ref_conv_bn_relu(x1, mod.b1c, 2, 0)
    x2 = lax.reduce_window(x, -jnp.inf, lax.max,
                           (1, 3, 3, 1), (1, 2, 2, 1), "VALID")
    out = jnp.concatenate([x0, x1, x2], axis=-1)
    return jnp.transpose(out, (0, 3, 1, 2))


if __name__ == "__main__":
    key = jax.random.PRNGKey(0)
    kx, kp = jax.random.split(key)

    # Small synthetic config: in_features=4, m(c) = c // 32 -> 12/6/7/8 channels.
    N, Cin, H, W = 2, 4, 16, 16
    x = jax.random.normal(kx, (N, Cin, H, W), jnp.float32)

    mod = ReductionA(kp, in_features=Cin, m=lambda c: c // 32)

    out = mod(x)
    out = jax.block_until_ready(out)

    expected_shape = (N, mod.out_features, (H - 3) // 2 + 1, (W - 3) // 2 + 1)
    assert out.shape == expected_shape, (out.shape, expected_shape)

    ref = jax.block_until_ready(_ref_forward(mod, x))
    # bf16 MXU operands (f32 accumulation) -> relaxed tolerance vs f32 reference.
    assert jnp.allclose(out, ref, atol=5e-2, rtol=5e-2), float(
        jnp.max(jnp.abs(out - ref)))

    print("KERNEL_OK")
</pallas_src>

<mosaic_0001>
module attributes {stable_mosaic.version = 11 : i64} {
  func.func @_matmul_bn_relu_kernel(%arg0: i32, %arg1: i32, %arg2: i32, %arg3: memref<104x128xbf16, #tpu.memory_space<vmem>>, %arg4: memref<128x128xbf16, #tpu.memory_space<vmem>>, %arg5: memref<1x128xf32, #tpu.memory_space<vmem>>, %arg6: memref<1x128xf32, #tpu.memory_space<vmem>>, %arg7: memref<104x128xf32, #tpu.memory_space<vmem>>, %arg8: memref<104x128xf32, #tpu.memory_space<vmem>>) attributes {dimension_semantics = [#tpu.dimension_semantics<parallel>, #tpu.dimension_semantics<parallel>, #tpu.dimension_semantics<arbitrary>], iteration_bounds = array<i64: 1, 1, 1>, scalar_prefetch = 0 : i64, scratch_operands = 1 : i64, tpu.core_type = #tpu.core_type<tc>, window_params = [{transform_indices = @transform_0, window_bounds = array<i64: 104, 128>}, {transform_indices = @transform_1, window_bounds = array<i64: 128, 128>}, {transform_indices = @transform_2, window_bounds = array<i64: 1, 128>}, {transform_indices = @transform_3, window_bounds = array<i64: 1, 128>}, {transform_indices = @transform_4, window_bounds = array<i64: 104, 128>}]} {
    %c0_i32 = arith.constant 0 : i32
    %0 = arith.cmpi eq, %arg2, %c0_i32 : i32
    %1 = arith.extui %0 : i1 to i32
    %c0_i32_0 = arith.constant 0 : i32
    %2 = arith.cmpi ne, %1, %c0_i32_0 : i32
    scf.if %2 {
      %cst_10 = arith.constant 0.000000e+00 : f32
      %12 = vector.broadcast %cst_10 : f32 to vector<104x128xf32>
      %c0_11 = arith.constant 0 : index
      %c0_12 = arith.constant 0 : index
      %13 = vector.load %arg8[%c0_11, %c0_12] : memref<104x128xf32, #tpu.memory_space<vmem>>, vector<104x128xf32>
      tpu.vector_store %arg8[%c0_11, %c0_12], %12 {strides = array<i32>} : memref<104x128xf32, #tpu.memory_space<vmem>>, vector<104x128xf32>,
    } else {
    }
    %c0 = arith.constant 0 : index
    %c0_1 = arith.constant 0 : index
    %3 = vector.load %arg8[%c0, %c0_1] : memref<104x128xf32, #tpu.memory_space<vmem>>, vector<104x128xf32>
    %c0_2 = arith.constant 0 : index
    %c0_3 = arith.constant 0 : index
    %4 = vector.load %arg3[%c0_2, %c0_3] : memref<104x128xbf16, #tpu.memory_space<vmem>>, vector<104x128xbf16>
    %c0_4 = arith.constant 0 : index
    %c0_5 = arith.constant 0 : index
    %5 = vector.load %arg4[%c0_4, %c0_5] : memref<128x128xbf16, #tpu.memory_space<vmem>>, vector<128x128xbf16>
    %cst = arith.constant dense<0.000000e+00> : vector<104x128xf32>
    %6 = tpu.matmul %4, %5, %cst {dimension_numbers = #tpu.dot_dimension_numbers<[1], [0], [0], [1], [0, 0, 1, 1], [], []>} : vector<104x128xbf16>, vector<128x128xbf16>, vector<104x128xf32> -> vector<104x128xf32>
    %7 = arith.addf %3, %6 : vector<104x128xf32>
    %c0_6 = arith.constant 0 : index
    %c0_7 = arith.constant 0 : index
    %8 = vector.load %arg8[%c0_6, %c0_7] : memref<104x128xf32, #tpu.memory_space<vmem>>, vector<104x128xf32>
    tpu.vector_store %arg8[%c0_6, %c0_7], %7 {strides = array<i32>} : memref<104x128xf32, #tpu.memory_space<vmem>>, vector<104x128xf32>,
    %c0_i32_8 = arith.constant 0 : i32
    %9 = arith.cmpi eq, %arg2, %c0_i32_8 : i32
    %10 = arith.extui %9 : i1 to i32
    %c0_i32_9 = arith.constant 0 : i32
    %11 = arith.cmpi ne, %10, %c0_i32_9 : i32
    scf.if %11 {
      %c0_10 = arith.constant 0 : index
      %c0_11 = arith.constant 0 : index
      %12 = vector.load %arg8[%c0_10, %c0_11] : memref<104x128xf32, #tpu.memory_space<vmem>>, vector<104x128xf32>
      %c0_12 = arith.constant 0 : index
      %c0_13 = arith.constant 0 : index
      %13 = vector.load %arg5[%c0_12, %c0_13] : memref<1x128xf32, #tpu.memory_space<vmem>>, vector<1x128xf32>
      %14 = vector.broadcast %13 : vector<1x128xf32> to vector<104x128xf32>
      %15 = arith.mulf %12, %14 : vector<104x128xf32>
      %c0_14 = arith.constant 0 : index
      %c0_15 = arith.constant 0 : index
      %16 = vector.load %arg6[%c0_14, %c0_15] : memref<1x128xf32, #tpu.memory_space<vmem>>, vector<1x128xf32>
      %17 = vector.broadcast %16 : vector<1x128xf32> to vector<104x128xf32>
      %18 = arith.addf %15, %17 : vector<104x128xf32>
      %cst_16 = arith.constant 0.000000e+00 : f32
      %19 = vector.broadcast %cst_16 : f32 to vector<104x128xf32>
      %20 = arith.maximumf %18, %19 : vector<104x128xf32>
      %c0_17 = arith.constant 0 : index
      %c0_18 = arith.constant 0 : index
      %21 = vector.load %arg7[%c0_17, %c0_18] : memref<104x128xf32, #tpu.memory_space<vmem>>, vector<104x128xf32>
      tpu.vector_store %arg7[%c0_17, %c0_18], %20 {strides = array<i32>} : memref<104x128xf32, #tpu.memory_space<vmem>>, vector<104x128xf32>,
    } else {
    }
    return
  }
  func.func @transform_0(%arg0: i32, %arg1: i32, %arg2: i32) -> (i32, i32) {
    %c0_i32 = arith.constant 0 : i32
    return %arg0, %arg2 : i32, i32
  }
  func.func @transform_1(%arg0: i32, %arg1: i32, %arg2: i32) -> (i32, i32) {
    %c0_i32 = arith.constant 0 : i32
    return %arg2, %arg1 : i32, i32
  }
  func.func @transform_2(%arg0: i32, %arg1: i32, %arg2: i32) -> (i32, i32) {
    %c0_i32 = arith.constant 0 : i32
    %c0_i32_0 = arith.constant 0 : i32
    return %c0_i32, %arg1 : i32, i32
  }
  func.func @transform_3(%arg0: i32, %arg1: i32, %arg2: i32) -> (i32, i32) {
    %c0_i32 = arith.constant 0 : i32
    %c0_i32_0 = arith.constant 0 : i32
    return %c0_i32, %arg1 : i32, i32
  }
  func.func @transform_4(%arg0: i32, %arg1: i32, %arg2: i32) -> (i32, i32) {
    %c0_i32 = arith.constant 0 : i32
    return %arg0, %arg1 : i32, i32
  }
}

</mosaic_0001>

<llo_original>
// kernel: tpu_custom_call.1
$region0: #{tpu_custom_call.1}
  #allocation0 [shape = 'u32[]', space=smem, size = 0x4, offset = 0x4, fixed_abs, tag = 'smem constant byte address 0x4 - core index']
  #allocation1 [shape = 'u32[72,128]{1,0:T(1,128)}', space=vmem, size = 0x9000, scoped, tag = 'internal scratch']
  #allocation2 [shape = 'f32[104,128]{1,0:T(8,128)}', space=vmem, size = 0xd000, scoped, tag = 'scratch operand']
  %s0 = inlined_call_operand.hbm [shape: bf16[104,128], index: 0, kind: input, shape index: {}]
  %s1 = inlined_call_operand.hbm [shape: bf16[128,128], index: 1, kind: input, shape index: {}]
  %s2 = inlined_call_operand.vmem [shape: f32[1,128], index: 2, kind: input, shape index: {}]
  %s3 = inlined_call_operand.vmem [shape: f32[1,128], index: 3, kind: input, shape index: {}]
  %s4 = inlined_call_operand.hbm [shape: f32[104,128], index: 4, kind: output, shape index: {}]
  %s5 = sld [smem:[#allocation0]]
  $region42: #{tpu_custom_call.1} parent=0
    _
  %s7 = ssub.s32 1, %s5
  %s8 = scalar_select 0, %s7, %s5
  $region1: #{tpu_custom_call.1} parent=0
    #allocation3 [shape = 'u8[26624]{0}', space=vmem, size = 0x6800, scoped, tag = 'input window, operand 0, single buffered']
    #allocation4 [shape = 's32[1]{0}', space=sflag, size = 0x4, scoped, tag = 'scoped memory for tpu_custom_call.1']
    #allocation5 [shape = 's32[1]{0}', space=sflag, size = 0x4, scoped, tag = 'scoped memory for tpu_custom_call.1']
    #allocation6 [shape = 'u8[32768]{0}', space=vmem, size = 0x8000, scoped, tag = 'input window, operand 1, single buffered']
    #allocation7 [shape = 's32[1]{0}', space=sflag, size = 0x4, scoped, tag = 'scoped memory for tpu_custom_call.1']
    #allocation8 [shape = 'u8[53248]{0}', space=vmem, size = 0xd000, scoped, tag = 'output window, operand 0, single buffered']
    %9 = vsyncpa [#allocation4], 0
    %10 = vsyncpa [#allocation7], 0
    %11 = vsyncpa [#allocation5], 0
    // Predicated region
    $region2: #{tpu_custom_call.1} parent=1 // pred_check
      _
    $region3: #{tpu_custom_call.1} parent=1 // pred_check_branch
      %13 = sbr.rel (0) target = $region5
    $region4: #{tpu_custom_call.1} parent=1 // pred_region
      %15 = vsyncadd [#allocation4], 0
      %s16 = sshll.u32 %s0, 4
      %s17 = int_to_ptr.hbm [resolvable:$true] %s16
      %s18 = sshll.u32 [#allocation3], 4
      %s19 = int_to_ptr.vmem [resolvable:$true] %s18
      %24 = dma.hbm_to_vmem [thread:$0]  %s17, 832, %s19, [#allocation4], 64, 64, 4
    $region5: #{tpu_custom_call.1} parent=1 // pred_fallthru
      _
    // Predicated region
    $region6: #{tpu_custom_call.1} parent=1 // pred_check
      _
    $region7: #{tpu_custom_call.1} parent=1 // pred_check_branch
      %26 = sbr.rel (0) target = $region9
    $region8: #{tpu_custom_call.1} parent=1 // pred_region
      %28 = vsyncadd [#allocation7], 0
      %s29 = sshll.u32 %s1, 4
      %s30 = int_to_ptr.hbm [resolvable:$true] %s29
      %s31 = sshll.u32 [#allocation6], 4
      %s32 = int_to_ptr.vmem [resolvable:$true] %s31
      %37 = dma.hbm_to_vmem [thread:$0]  %s30, 1024, %s32, [#allocation7], 64, 64, 4
    $region9: #{tpu_custom_call.1} parent=1 // pred_fallthru
      _
    // Predicated region
    $region10: #{tpu_custom_call.1} parent=1 // pred_check
      _
    $region11: #{tpu_custom_call.1} parent=1 // pred_check_branch
      %39 = sbr.rel (0) target = $region13
    $region12: #{tpu_custom_call.1} parent=1 // pred_region
      _
    $region13: #{tpu_custom_call.1} parent=1 // pred_fallthru
      _
    // Predicated region
    $region14: #{tpu_custom_call.1} parent=1 // pred_check
      _
    $region15: #{tpu_custom_call.1} parent=1 // pred_check_branch
      %41 = sbr.rel (0) target = $region17
    $region16: #{tpu_custom_call.1} parent=1 // pred_region
      _
    $region17: #{tpu_custom_call.1} parent=1 // pred_fallthru
      _
    // Predicated region
    $region18: #{tpu_custom_call.1} parent=1 // pred_check
      _
    $region19: #{tpu_custom_call.1} parent=1 // pred_check_branch
      %43 = sbr.rel (0) target = $region21
    $region20: #{tpu_custom_call.1} parent=1 // pred_region
      %45 = dma.done [#allocation4], 832
    $region21: #{tpu_custom_call.1} parent=1 // pred_fallthru
      _
    // Predicated region
    $region22: #{tpu_custom_call.1} parent=1 // pred_check
      _
    $region23: #{tpu_custom_call.1} parent=1 // pred_check_branch
      %47 = sbr.rel (0) target = $region25
    $region24: #{tpu_custom_call.1} parent=1 // pred_region
      %49 = dma.done [#allocation7], 1024
    $region25: #{tpu_custom_call.1} parent=1 // pred_fallthru
      _
    %p50 = scmp.eq.s32.totalorder 0, 0
    // Predicated region
    $region26: #{tpu_custom_call.1} parent=1 // pred_check
      %p51 = pneg %p50
    $region27: #{tpu_custom_call.1} parent=1 // pred_check_branch
      %53 = sbr.rel (%p51) target = $region29
    $region28: #{tpu_custom_call.1} parent=1 // pred_region
      %54 = vst [vmem:[#allocation2] sm:$0xff] 0.0
      %55 = vst [vmem:[#allocation2 + $0x8] sm:$0xff] 0.0
      %56 = vst [vmem:[#allocation2 + $0x10] sm:$0xff] 0.0
      %57 = vst [vmem:[#allocation2 + $0x18] sm:$0xff] 0.0
      %58 = vst [vmem:[#allocation2 + $0x20] sm:$0xff] 0.0
      %59 = vst [vmem:[#allocation2 + $0x28] sm:$0xff] 0.0
      %60 = vst [vmem:[#allocation2 + $0x30] sm:$0xff] 0.0
      %61 = vst [vmem:[#allocation2 + $0x38] sm:$0xff] 0.0
      %62 = vst [vmem:[#allocation2 + $0x40] sm:$0xff] 0.0
      %63 = vst [vmem:[#allocation2 + $0x48] sm:$0xff] 0.0
      %64 = vst [vmem:[#allocation2 + $0x50] sm:$0xff] 0.0
      %65 = vst [vmem:[#allocation2 + $0x58] sm:$0xff] 0.0
      %66 = vst [vmem:[#allocation2 + $0x60] sm:$0xff] 0.0
    $region29: #{tpu_custom_call.1} parent=1 // pred_fallthru
      _
    %v67 = vld [vmem:[#allocation2] sm:$0xff]
    %v68 = vld [vmem:[#allocation2 + $0x8] sm:$0xff]
    %v69 = vld [vmem:[#allocation2 + $0x10] sm:$0xff]
    %v70 = vld [vmem:[#allocation2 + $0x18] sm:$0xff]
    %v71 = vld [vmem:[#allocation2 + $0x20] sm:$0xff]
    %v72 = vld [vmem:[#allocation2 + $0x28] sm:$0xff]
    %v73 = vld [vmem:[#allocation2 + $0x30] sm:$0xff]
    %v74 = vld [vmem:[#allocation2 + $0x38] sm:$0xff]
    %v75 = vld [vmem:[#allocation2 + $0x40] sm:$0xff]
    %v76 = vld [vmem:[#allocation2 + $0x48] sm:$0xff]
    %v77 = vld [vmem:[#allocation2 + $0x50] sm:$0xff]
    %v78 = vld [vmem:[#allocation2 + $0x58] sm:$0xff]
    %v79 = vld [vmem:[#allocation2 + $0x60] sm:$0xff]
    %v80 = vld [vmem:[#allocation3] sm:$0xf]
    %v81 = vld [vmem:[#allocation3 + $0x4] sm:$0xf]
    %v82 = vld [vmem:[#allocation3 + $0x8] sm:$0xf]
    %v83 = vld [vmem:[#allocation3 + $0xc] sm:$0xf]
    %v84 = vld [vmem:[#allocation3 + $0x10] sm:$0xf]
    %v85 = vld [vmem:[#allocation3 + $0x14] sm:$0xf]
    %v86 = vld [vmem:[#allocation3 + $0x18] sm:$0xf]
    %v87 = vld [vmem:[#allocation3 + $0x1c] sm:$0xf]
    %v88 = vld [vmem:[#allocation3 + $0x20] sm:$0xf]
    %v89 = vld [vmem:[#allocation3 + $0x24] sm:$0xf]
    %v90 = vld [vmem:[#allocation3 + $0x28] sm:$0xf]
    %v91 = vld [vmem:[#allocation3 + $0x2c] sm:$0xf]
    %v92 = vld [vmem:[#allocation3 + $0x30] sm:$0xf]
    %v93 = vld [vmem:[#allocation6] sm:$0xf]
    %v94 = vld [vmem:[#allocation6 + $0x4] sm:$0xf]
    %v95 = vld [vmem:[#allocation6 + $0x8] sm:$0xf]
    %v96 = vld [vmem:[#allocation6 + $0xc] sm:$0xf]
    %v97 = vld [vmem:[#allocation6 + $0x10] sm:$0xf]
    %v98 = vld [vmem:[#allocation6 + $0x14] sm:$0xf]
    %v99 = vld [vmem:[#allocation6 + $0x18] sm:$0xf]
    %v100 = vld [vmem:[#allocation6 + $0x1c] sm:$0xf]
    %v101 = vld [vmem:[#allocation6 + $0x20] sm:$0xf]
    %v102 = vld [vmem:[#allocation6 + $0x24] sm:$0xf]
    %v103 = vld [vmem:[#allocation6 + $0x28] sm:$0xf]
    %v104 = vld [vmem:[#allocation6 + $0x2c] sm:$0xf]
    %v105 = vld [vmem:[#allocation6 + $0x30] sm:$0xf]
    %v106 = vld [vmem:[#allocation6 + $0x34] sm:$0xf]
    %v107 = vld [vmem:[#allocation6 + $0x38] sm:$0xf]
    %v108 = vld [vmem:[#allocation6 + $0x3c] sm:$0xf]
    %v122 = vunpack.c.l.b16 %v80
    %v123 = vunpack.c.l.b16 %v81
    %v124 = vunpack.c.l.b16 %v82
    %v125 = vunpack.c.l.b16 %v83
    %v126 = vunpack.c.l.b16 %v84
    %v127 = vunpack.c.l.b16 %v85
    %v128 = vunpack.c.l.b16 %v86
    %v129 = vunpack.c.l.b16 %v87
    %v130 = vunpack.c.l.b16 %v88
    %v131 = vunpack.c.l.b16 %v89
    %v132 = vunpack.c.l.b16 %v90
    %v133 = vunpack.c.l.b16 %v91
    %v134 = vunpack.c.l.b16 %v92
    %v135 = vpack.c.b16 %v123, %v122
    %v136 = vpack.c.b16 %v125, %v124
    %v137 = vpack.c.b16 %v127, %v126
    %v138 = vpack.c.b16 %v129, %v128
    %v139 = vpack.c.b16 %v131, %v130
    %v140 = vpack.c.b16 %v133, %v132
    %v141 = vpack.c.b16 %v134, %v134
    %v165 = vunpack.c.l.b16 %v93
    %v166 = vunpack.c.l.b16 %v94
    %v167 = vunpack.c.l.b16 %v95
    %v168 = vunpack.c.l.b16 %v96
    %v169 = vunpack.c.l.b16 %v97
    %v170 = vunpack.c.l.b16 %v98
    %v171 = vunpack.c.l.b16 %v99
    %v172 = vunpack.c.l.b16 %v100
    %v173 = vunpack.c.l.b16 %v101
    %v174 = vunpack.c.l.b16 %v102
    %v175 = vunpack.c.l.b16 %v103
    %v176 = vunpack.c.l.b16 %v104
    %v177 = vunpack.c.l.b16 %v105
    %v178 = vunpack.c.l.b16 %v106
    %v179 = vunpack.c.l.b16 %v107
    %v180 = vunpack.c.l.b16 %v108
    %v181 = vpack.c.b16 %v166, %v165
    %v182 = vpack.c.b16 %v168, %v167
    %v183 = vpack.c.b16 %v170, %v169
    %v184 = vpack.c.b16 %v172, %v171
    %v185 = vpack.c.b16 %v174, %v173
    %v186 = vpack.c.b16 %v176, %v175
    %v187 = vpack.c.b16 %v178, %v177
    %v188 = vpack.c.b16 %v180, %v179
    %197 = vmatpush.bf16.msra.mxu0 %v188
    %198 = vmatpush.bf16.msra.mxu0 %v187
    %199 = vmatpush.bf16.msra.mxu0 %v186
    %200 = vmatpush.bf16.msra.mxu0 %v185
    %201 = vmatpush.bf16.msra.mxu0 %v184
    %202 = vmatpush.bf16.msra.mxu0 %v183
    %203 = vmatpush.bf16.msra.mxu0 %v182
    %204 = vmatpush.bf16.msra.mxu0 %v181
    %205 = vmatmul.bf16.gmra.mxu0 %v135
    %v206 = vpop.f32.mrf.mxu0
    %v207 = vadd.f32 0.0, %v206
    %v208 = vpop.f32.mrf.mxu0
    %v209 = vadd.f32 0.0, %v208
    %210 = vmatmul.bf16.gmra.mxu0 %v136
    %v211 = vpop.f32.mrf.mxu0
    %v212 = vadd.f32 0.0, %v211
    %v213 = vpop.f32.mrf.mxu0
    %v214 = vadd.f32 0.0, %v213
    %215 = vmatmul.bf16.gmra.mxu0 %v137
    %v216 = vpop.f32.mrf.mxu0
    %v217 = vadd.f32 0.0, %v216
    %v218 = vpop.f32.mrf.mxu0
    %v219 = vadd.f32 0.0, %v218
    %220 = vmatmul.bf16.gmra.mxu0 %v138
    %v221 = vpop.f32.mrf.mxu0
    %v222 = vadd.f32 0.0, %v221
    %v223 = vpop.f32.mrf.mxu0
    %v224 = vadd.f32 0.0, %v223
    %225 = vmatmul.bf16.gmra.mxu0 %v139
    %v226 = vpop.f32.mrf.mxu0
    %v227 = vadd.f32 0.0, %v226
    %v228 = vpop.f32.mrf.mxu0
    %v229 = vadd.f32 0.0, %v228
    %230 = vmatmul.bf16.gmra.mxu0 %v140
    %v231 = vpop.f32.mrf.mxu0
    %v232 = vadd.f32 0.0, %v231
    %v233 = vpop.f32.mrf.mxu0
    %v234 = vadd.f32 0.0, %v233
    %235 = vmatmul.bf16.gmra.mxu0 %v141
    %v236 = vpop.f32.mrf.mxu0
    %v237 = vadd.f32 0.0, %v236
    %v238 = vpop.f32.mrf.mxu0
    %239 = vdwg.mxu0
    %v240 = vadd.f32 %v67, %v207
    %v241 = vadd.f32 %v68, %v209
    %v242 = vadd.f32 %v69, %v212
    %v243 = vadd.f32 %v70, %v214
    %v244 = vadd.f32 %v71, %v217
    %v245 = vadd.f32 %v72, %v219
    %v246 = vadd.f32 %v73, %v222
    %v247 = vadd.f32 %v74, %v224
    %v248 = vadd.f32 %v75, %v227
    %v249 = vadd.f32 %v76, %v229
    %v250 = vadd.f32 %v77, %v232
    %v251 = vadd.f32 %v78, %v234
    %v252 = vadd.f32 %v79, %v237
    %253 = vst [vmem:[#allocation2] sm:$0xff] %v240
    %254 = vst [vmem:[#allocation2 + $0x8] sm:$0xff] %v241
    %255 = vst [vmem:[#allocation2 + $0x10] sm:$0xff] %v242
    %256 = vst [vmem:[#allocation2 + $0x18] sm:$0xff] %v243
    %257 = vst [vmem:[#allocation2 + $0x20] sm:$0xff] %v244
    %258 = vst [vmem:[#allocation2 + $0x28] sm:$0xff] %v245
    %259 = vst [vmem:[#allocation2 + $0x30] sm:$0xff] %v246
    %260 = vst [vmem:[#allocation2 + $0x38] sm:$0xff] %v247
    %261 = vst [vmem:[#allocation2 + $0x40] sm:$0xff] %v248
    %262 = vst [vmem:[#allocation2 + $0x48] sm:$0xff] %v249
    %263 = vst [vmem:[#allocation2 + $0x50] sm:$0xff] %v250
    %264 = vst [vmem:[#allocation2 + $0x58] sm:$0xff] %v251
    %265 = vst [vmem:[#allocation2 + $0x60] sm:$0xff] %v252
    // Predicated region
    $region30: #{tpu_custom_call.1} parent=1 // pred_check
      %p266 = pneg %p50
    $region31: #{tpu_custom_call.1} parent=1 // pred_check_branch
      %268 = sbr.rel (%p266) target = $region33
    $region32: #{tpu_custom_call.1} parent=1 // pred_region
      %v269 = vld [vmem:[#allocation2] sm:$0xff]
      %v270 = vld [vmem:[#allocation2 + $0x8] sm:$0xff]
      %v271 = vld [vmem:[#allocation2 + $0x10] sm:$0xff]
      %v272 = vld [vmem:[#allocation2 + $0x18] sm:$0xff]
      %v273 = vld [vmem:[#allocation2 + $0x20] sm:$0xff]
      %v274 = vld [vmem:[#allocation2 + $0x28] sm:$0xff]
      %v275 = vld [vmem:[#allocation2 + $0x30] sm:$0xff]
      %v276 = vld [vmem:[#allocation2 + $0x38] sm:$0xff]
      %v277 = vld [vmem:[#allocation2 + $0x40] sm:$0xff]
      %v278 = vld [vmem:[#allocation2 + $0x48] sm:$0xff]
      %v279 = vld [vmem:[#allocation2 + $0x50] sm:$0xff]
      %v280 = vld [vmem:[#allocation2 + $0x58] sm:$0xff]
      %v281 = vld [vmem:[#allocation2 + $0x60] sm:$0xff]
      %v282 = vld [vmem:[%s2] sm:$0x1]
      %v284 = vperm.slane %v282, 0
      %v286 = vmul.f32 %v269, %v284
      %v287 = vmul.f32 %v270, %v284
      %v288 = vmul.f32 %v271, %v284
      %v289 = vmul.f32 %v272, %v284
      %v290 = vmul.f32 %v273, %v284
      %v291 = vmul.f32 %v274, %v284
      %v292 = vmul.f32 %v275, %v284
      %v293 = vmul.f32 %v276, %v284
      %v294 = vmul.f32 %v277, %v284
      %v295 = vmul.f32 %v278, %v284
      %v296 = vmul.f32 %v279, %v284
      %v297 = vmul.f32 %v280, %v284
      %v298 = vmul.f32 %v281, %v284
      %v299 = vld [vmem:[%s3] sm:$0x1]
      %v301 = vperm.slane %v299, 0
      %v303 = vadd.f32 %v286, %v301
      %v304 = vadd.f32 %v287, %v301
      %v305 = vadd.f32 %v288, %v301
      %v306 = vadd.f32 %v289, %v301
      %v307 = vadd.f32 %v290, %v301
      %v308 = vadd.f32 %v291, %v301
      %v309 = vadd.f32 %v292, %v301
      %v310 = vadd.f32 %v293, %v301
      %v311 = vadd.f32 %v294, %v301
      %v312 = vadd.f32 %v295, %v301
      %v313 = vadd.f32 %v296, %v301
      %v314 = vadd.f32 %v297, %v301
      %v315 = vadd.f32 %v298, %v301
      %v316 = vmax.f32 %v303, 0.0
      %v317 = vmax.f32 %v304, 0.0
      %v318 = vmax.f32 %v305, 0.0
      %v319 = vmax.f32 %v306, 0.0
      %v320 = vmax.f32 %v307, 0.0
      %v321 = vmax.f32 %v308, 0.0
      %v322 = vmax.f32 %v309, 0.0
      %v323 = vmax.f32 %v310, 0.0
      %v324 = vmax.f32 %v311, 0.0
      %v325 = vmax.f32 %v312, 0.0
      %v326 = vmax.f32 %v313, 0.0
      %v327 = vmax.f32 %v314, 0.0
      %v328 = vmax.f32 %v315, 0.0
      %329 = vst [vmem:[#allocation8] sm:$0xff] %v316
      %330 = vst [vmem:[#allocation8 + $0x8] sm:$0xff] %v317
      %331 = vst [vmem:[#allocation8 + $0x10] sm:$0xff] %v318
      %332 = vst [vmem:[#allocation8 + $0x18] sm:$0xff] %v319
      %333 = vst [vmem:[#allocation8 + $0x20] sm:$0xff] %v320
      %334 = vst [vmem:[#allocation8 + $0x28] sm:$0xff] %v321
      %335 = vst [vmem:[#allocation8 + $0x30] sm:$0xff] %v322
      %336 = vst [vmem:[#allocation8 + $0x38] sm:$0xff] %v323
      %337 = vst [vmem:[#allocation8 + $0x40] sm:$0xff] %v324
      %338 = vst [vmem:[#allocation8 + $0x48] sm:$0xff] %v325
      %339 = vst [vmem:[#allocation8 + $0x50] sm:$0xff] %v326
      %340 = vst [vmem:[#allocation8 + $0x58] sm:$0xff] %v327
      %341 = vst [vmem:[#allocation8 + $0x60] sm:$0xff] %v328
    $region33: #{tpu_custom_call.1} parent=1 // pred_fallthru
      _
    // Predicated region
    $region34: #{tpu_custom_call.1} parent=1 // pred_check
      _
    $region35: #{tpu_custom_call.1} parent=1 // pred_check_branch
      %343 = sbr.rel (0) target = $region37
    $region36: #{tpu_custom_call.1} parent=1 // pred_region
      %345 = vsyncadd [#allocation5], 0
      %s346 = sshll.u32 [#allocation8], 4
      %s347 = int_to_ptr.vmem [resolvable:$true] %s346
      %s348 = sshll.u32 %s4, 4
      %s349 = int_to_ptr.hbm [resolvable:$true] %s348
      %354 = dma.vmem_to_hbm [thread:$0]  %s347, 1664, %s349, [#allocation5], 128, 128, 8
    $region37: #{tpu_custom_call.1} parent=1 // pred_fallthru
      _
    // Predicated region
    $region38: #{tpu_custom_call.1} parent=1 // pred_check
      _
    $region39: #{tpu_custom_call.1} parent=1 // pred_check_branch
      %356 = sbr.rel (0) target = $region41
    $region40: #{tpu_custom_call.1} parent=1 // pred_region
      %358 = dma.done [#allocation5], 1664
    $region41: #{tpu_custom_call.1} parent=1 // pred_fallthru
      _
    %359 = vsyncpa [#allocation4], 1
    %360 = vsyncpa [#allocation7], 1
    %361 = vsyncpa [#allocation5], 1

</llo_original>
